<compile_context>
chip_gen: v5e
topology: v5e:2x2
jax: 0.10.0
libtpu: 0.0.40
codegen_flags: <defaults>
</compile_context>

<pallas_src>
import jax
import jax.numpy as jnp
from jax.experimental import pallas as pl
from jax.experimental.pallas import tpu as pltpu


def _round_up(x: int, m: int) -> int:
    return (x + m - 1) // m * m


def _pick_tile(dim: int, gran: int, max_tile: int) -> int:
    """Largest multiple of `gran` (<= max_tile) that divides round_up(dim, gran).

    Keeps tiles lane/sublane aligned while guaranteeing zero wasted (all-zero)
    grid steps: total padding is at most gran - 1 elements.
    """
    dim_g = _round_up(dim, gran)
    limit = max(gran, min(max_tile, dim_g))
    best = gran
    t = gran
    while t <= limit:
        if dim_g % t == 0:
            best = t
        t += gran
    return best


def _lora_linear_kernel(x_ref, wt_ref, xa_ref, b_ref, bias_ref, o_ref, acc_ref):
    k = pl.program_id(2)

    @pl.when(k == 0)
    def _():
        acc_ref[...] = jnp.zeros_like(acc_ref)

    # Dense frozen projection partial sum: x_k @ W^T_k (MXU, f32 accumulation).
    acc_ref[...] += jnp.dot(x_ref[...], wt_ref[...],
                            preferred_element_type=jnp.float32)

    @pl.when(k == pl.num_programs(2) - 1)
    def _():
        # Low-rank correction, computed ONCE per (i, j) output tile:
        # (tm, R) @ (R, tn). xA already carries the alpha/r scaling.
        lora = jnp.dot(xa_ref[...], b_ref[...],
                       preferred_element_type=jnp.float32)
        o_ref[...] = (acc_ref[...] + lora + bias_ref[...]).astype(o_ref.dtype)


def init_lora_linear(weight, bias, lora_a, lora_b, scaling, *,
                     param_dtype=None, max_tn=256, max_tk=None):
    """One-time parameter preparation (kept OUT of the per-call hot path).

    weight: [N, K]  frozen weight, PyTorch [out_features, in_features] layout
    bias:   [N] or None
    lora_a: [K, R]
    lora_b: [R, N]
    """
    N, K = weight.shape
    Ka, R = lora_a.shape
    assert Ka == K and lora_b.shape == (R, N)

    if param_dtype is None:
        param_dtype = weight.dtype
    param_dtype = jnp.dtype(param_dtype)
    if max_tk is None:
        # bf16 halves per-tile bytes -> afford a deeper K tile.
        max_tk = 2048 if param_dtype.itemsize <= 2 else 1024

    tn = _pick_tile(N, 128, max_tn)
    tk = _pick_tile(K, 128, max_tk)
    N_p = _round_up(N, 128)
    K_p = _round_up(K, 128)

    # Frozen weight: transpose + cast + pad ONCE, at init time.
    wt = jnp.pad(weight.T.astype(param_dtype), ((0, K_p - K), (0, N_p - N)))
    # alpha/r folded into A once (exact by linearity); kept f32 for the tiny
    # per-call xA pre-pass.
    a_scaled = lora_a.astype(jnp.float32) * float(scaling)
    b_p = jnp.pad(lora_b.astype(jnp.float32), ((0, 0), (0, N_p - N)))
    if bias is None:
        bias2d = jnp.zeros((1, N_p), jnp.float32)
    else:
        bias2d = jnp.pad(bias.astype(jnp.float32).reshape(1, N),
                         ((0, 0), (0, N_p - N)))

    return dict(wt=wt, a_scaled=a_scaled, b=b_p, bias=bias2d,
                N=N, K=K, R=R, tn=tn, tk=tk, N_p=N_p, K_p=K_p,
                param_dtype=param_dtype)


def lora_linear_apply(params, x, *, max_tm=256):
    """Forward: x [M, K] -> [M, N] = x @ W^T + bias + (x @ A @ B) * scaling."""
    M, K = x.shape
    assert K == params["K"]
    N, R = params["N"], params["R"]
    N_p, K_p = params["N_p"], params["K_p"]
    tn, tk = params["tn"], params["tk"]
    out_dtype = x.dtype

    # Tiny LoRA pre-pass: xA = x @ (scaling * A), shape [M, R] with R << 128.
    # Doing it here (f32) removes the near-empty MXU passes from the K loop
    # and the (K_p/tk)-fold recomputation of xA @ B.
    xa = x.astype(jnp.float32) @ params["a_scaled"]

    # Dense-path compute dtype follows the stored frozen weight (e.g. bf16).
    xk = x.astype(params["param_dtype"])
    sub = 8 * max(1, 4 // params["param_dtype"].itemsize)
    tm = _pick_tile(M, sub, max_tm)
    M_p = _round_up(M, sub)

    # If there is a single (i, j) output tile, split M so both TensorCores of
    # a v7x megacore get work (K stays "arbitrary", accumulated in place).
    if (M_p // tm) * (N_p // tn) < 2 and tm % (2 * sub) == 0:
        tm //= 2

    if (M_p, K_p) != (M, K):
        xk = jnp.pad(xk, ((0, M_p - M), (0, K_p - K)))
    if M_p != M:
        xa = jnp.pad(xa, ((0, M_p - M), (0, 0)))

    out = pl.pallas_call(
        _lora_linear_kernel,
        out_shape=jax.ShapeDtypeStruct((M_p, N_p), out_dtype),
        grid_spec=pltpu.PrefetchScalarGridSpec(
            num_scalar_prefetch=0,
            grid=(M_p // tm, N_p // tn, K_p // tk),
            in_specs=[
                pl.BlockSpec((tm, tk), lambda i, j, k: (i, k)),   # x tile
                pl.BlockSpec((tk, tn), lambda i, j, k: (k, j)),   # W^T tile
                pl.BlockSpec((tm, R), lambda i, j, k: (i, 0)),    # xA (k-invariant)
                pl.BlockSpec((R, tn), lambda i, j, k: (0, j)),    # B  (k-invariant)
                pl.BlockSpec((1, tn), lambda i, j, k: (0, j)),    # bias
            ],
            out_specs=pl.BlockSpec((tm, tn), lambda i, j, k: (i, j)),
            scratch_shapes=[pltpu.VMEM((tm, tn), jnp.float32)],
        ),
        # Double-buffered footprint stays well below the default scoped-VMEM
        # budget on v5e/v6e/v7x with these tile caps, so no vmem_limit_bytes.
        compiler_params=pltpu.CompilerParams(
            dimension_semantics=("parallel", "parallel", "arbitrary")),
    )(xk, params["wt"], xa, params["b"], params["bias"])

    if (M_p, N_p) != (M, N):
        out = out[:M, :N]
    return out


if __name__ == "__main__":
    # Small, module-consistent shapes; intentionally NOT tile-aligned so the
    # padding / tail handling is exercised.
    M, K, N, R = 12, 40, 72, 4          # batch, in_features, out_features, rank
    alpha = 8
    scaling = alpha / R                 # = 2.0

    key = jax.random.PRNGKey(0)
    k_x, k_w, k_bias, k_a, k_b = jax.random.split(key, 5)

    x = jax.random.normal(k_x, (M, K), dtype=jnp.float32)
    weight = jax.random.normal(k_w, (N, K), dtype=jnp.float32) * 0.05  # PyTorch [out, in]
    bias = jax.random.normal(k_bias, (N,), dtype=jnp.float32) * 0.1
    # kaiming_uniform_(a=sqrt(5)) style bound for lora_a.
    bound = (6.0 / ((1.0 + 5.0) * K)) ** 0.5
    lora_a = jax.random.uniform(k_a, (K, R), dtype=jnp.float32,
                                minval=-bound, maxval=bound)
    # Module inits lora_b to zeros; use small random values here so the
    # low-rank path is numerically exercised in this synthetic test.
    lora_b = jax.random.normal(k_b, (R, N), dtype=jnp.float32) * 0.02

    # Pure-JAX reference (matches the PyTorch forward exactly).
    ref = x @ weight.T + bias + (x @ lora_a @ lora_b) * scaling

    # f32 frozen weight: exact check.
    params_f32 = init_lora_linear(weight, bias, lora_a, lora_b, scaling)
    out_f32 = jax.block_until_ready(lora_linear_apply(params_f32, x))
    assert out_f32.shape == (M, N)
    assert jnp.allclose(out_f32, ref, rtol=1e-5, atol=1e-5), "f32 mismatch vs reference"

    # bf16 frozen weight (init-time cast) with f32 MXU accumulation: halves
    # HBM traffic on the dominant stream; looser tolerance for bf16 rounding.
    params_bf16 = init_lora_linear(weight, bias, lora_a, lora_b, scaling,
                                   param_dtype=jnp.bfloat16)
    out_bf16 = jax.block_until_ready(lora_linear_apply(params_bf16, x))
    assert out_bf16.shape == (M, N)
    assert jnp.allclose(out_bf16.astype(jnp.float32), ref,
                        rtol=5e-2, atol=5e-2), "bf16 mismatch vs reference"

    print("KERNEL_OK")
</pallas_src>

<mosaic_0001>
module attributes {stable_mosaic.version = 11 : i64} {
  func.func @_lora_linear_kernel(%arg0: i32, %arg1: i32, %arg2: i32, %arg3: memref<8x128xf32, #tpu.memory_space<vmem>>, %arg4: memref<128x128xf32, #tpu.memory_space<vmem>>, %arg5: memref<8x4xf32, #tpu.memory_space<vmem>>, %arg6: memref<4x128xf32, #tpu.memory_space<vmem>>, %arg7: memref<1x128xf32, #tpu.memory_space<vmem>>, %arg8: memref<8x128xf32, #tpu.memory_space<vmem>>, %arg9: memref<8x128xf32, #tpu.memory_space<vmem>>) attributes {dimension_semantics = [#tpu.dimension_semantics<parallel>, #tpu.dimension_semantics<parallel>, #tpu.dimension_semantics<arbitrary>], iteration_bounds = array<i64: 2, 1, 1>, scalar_prefetch = 0 : i64, scratch_operands = 1 : i64, tpu.core_type = #tpu.core_type<tc>, window_params = [{transform_indices = @transform_0, window_bounds = array<i64: 8, 128>}, {transform_indices = @transform_1, window_bounds = array<i64: 128, 128>}, {transform_indices = @transform_2, window_bounds = array<i64: 8, 4>}, {transform_indices = @transform_3, window_bounds = array<i64: 4, 128>}, {transform_indices = @transform_4, window_bounds = array<i64: 1, 128>}, {transform_indices = @transform_5, window_bounds = array<i64: 8, 128>}]} {
    %c0_i32 = arith.constant 0 : i32
    %0 = arith.cmpi eq, %arg2, %c0_i32 : i32
    %1 = arith.extui %0 : i1 to i32
    %c0_i32_0 = arith.constant 0 : i32
    %2 = arith.cmpi ne, %1, %c0_i32_0 : i32
    scf.if %2 {
      %cst_10 = arith.constant 0.000000e+00 : f32
      %12 = vector.broadcast %cst_10 : f32 to vector<8x128xf32>
      %c0_11 = arith.constant 0 : index
      %c0_12 = arith.constant 0 : index
      %13 = vector.load %arg9[%c0_11, %c0_12] : memref<8x128xf32, #tpu.memory_space<vmem>>, vector<8x128xf32>
      tpu.vector_store %arg9[%c0_11, %c0_12], %12 {strides = array<i32>} : memref<8x128xf32, #tpu.memory_space<vmem>>, vector<8x128xf32>,
    } else {
    }
    %c0 = arith.constant 0 : index
    %c0_1 = arith.constant 0 : index
    %3 = vector.load %arg9[%c0, %c0_1] : memref<8x128xf32, #tpu.memory_space<vmem>>, vector<8x128xf32>
    %c0_2 = arith.constant 0 : index
    %c0_3 = arith.constant 0 : index
    %4 = vector.load %arg3[%c0_2, %c0_3] : memref<8x128xf32, #tpu.memory_space<vmem>>, vector<8x128xf32>
    %c0_4 = arith.constant 0 : index
    %c0_5 = arith.constant 0 : index
    %5 = vector.load %arg4[%c0_4, %c0_5] : memref<128x128xf32, #tpu.memory_space<vmem>>, vector<128x128xf32>
    %cst = arith.constant dense<0.000000e+00> : vector<8x128xf32>
    %6 = tpu.matmul %4, %5, %cst {dimension_numbers = #tpu.dot_dimension_numbers<[1], [0], [0], [1], [0, 0, 1, 1], [], []>} : vector<8x128xf32>, vector<128x128xf32>, vector<8x128xf32> -> vector<8x128xf32>
    %7 = arith.addf %3, %6 : vector<8x128xf32>
    %c0_6 = arith.constant 0 : index
    %c0_7 = arith.constant 0 : index
    %8 = vector.load %arg9[%c0_6, %c0_7] : memref<8x128xf32, #tpu.memory_space<vmem>>, vector<8x128xf32>
    tpu.vector_store %arg9[%c0_6, %c0_7], %7 {strides = array<i32>} : memref<8x128xf32, #tpu.memory_space<vmem>>, vector<8x128xf32>,
    %c0_i32_8 = arith.constant 0 : i32
    %9 = arith.cmpi eq, %arg2, %c0_i32_8 : i32
    %10 = arith.extui %9 : i1 to i32
    %c0_i32_9 = arith.constant 0 : i32
    %11 = arith.cmpi ne, %10, %c0_i32_9 : i32
    scf.if %11 {
      %c0_10 = arith.constant 0 : index
      %c0_11 = arith.constant 0 : index
      %12 = vector.load %arg5[%c0_10, %c0_11] : memref<8x4xf32, #tpu.memory_space<vmem>>, vector<8x4xf32>
      %c0_12 = arith.constant 0 : index
      %c0_13 = arith.constant 0 : index
      %13 = vector.load %arg6[%c0_12, %c0_13] : memref<4x128xf32, #tpu.memory_space<vmem>>, vector<4x128xf32>
      %cst_14 = arith.constant dense<0.000000e+00> : vector<8x128xf32>
      %14 = tpu.matmul %12, %13, %cst_14 {dimension_numbers = #tpu.dot_dimension_numbers<[1], [0], [0], [1], [0, 0, 1, 1], [], []>} : vector<8x4xf32>, vector<4x128xf32>, vector<8x128xf32> -> vector<8x128xf32>
      %c0_15 = arith.constant 0 : index
      %c0_16 = arith.constant 0 : index
      %15 = vector.load %arg9[%c0_15, %c0_16] : memref<8x128xf32, #tpu.memory_space<vmem>>, vector<8x128xf32>
      %16 = arith.addf %15, %14 : vector<8x128xf32>
      %c0_17 = arith.constant 0 : index
      %c0_18 = arith.constant 0 : index
      %17 = vector.load %arg7[%c0_17, %c0_18] : memref<1x128xf32, #tpu.memory_space<vmem>>, vector<1x128xf32>
      %18 = vector.broadcast %17 : vector<1x128xf32> to vector<8x128xf32>
      %19 = arith.addf %16, %18 : vector<8x128xf32>
      %c0_19 = arith.constant 0 : index
      %c0_20 = arith.constant 0 : index
      %20 = vector.load %arg8[%c0_19, %c0_20] : memref<8x128xf32, #tpu.memory_space<vmem>>, vector<8x128xf32>
      tpu.vector_store %arg8[%c0_19, %c0_20], %19 {strides = array<i32>} : memref<8x128xf32, #tpu.memory_space<vmem>>, vector<8x128xf32>,
    } else {
    }
    return
  }
  func.func @transform_0(%arg0: i32, %arg1: i32, %arg2: i32) -> (i32, i32) {
    %c0_i32 = arith.constant 0 : i32
    return %arg0, %arg2 : i32, i32
  }
  func.func @transform_1(%arg0: i32, %arg1: i32, %arg2: i32) -> (i32, i32) {
    %c0_i32 = arith.constant 0 : i32
    return %arg2, %arg1 : i32, i32
  }
  func.func @transform_2(%arg0: i32, %arg1: i32, %arg2: i32) -> (i32, i32) {
    %c0_i32 = arith.constant 0 : i32
    %c0_i32_0 = arith.constant 0 : i32
    return %arg0, %c0_i32 : i32, i32
  }
  func.func @transform_3(%arg0: i32, %arg1: i32, %arg2: i32) -> (i32, i32) {
    %c0_i32 = arith.constant 0 : i32
    %c0_i32_0 = arith.constant 0 : i32
    return %c0_i32, %arg1 : i32, i32
  }
  func.func @transform_4(%arg0: i32, %arg1: i32, %arg2: i32) -> (i32, i32) {
    %c0_i32 = arith.constant 0 : i32
    %c0_i32_0 = arith.constant 0 : i32
    return %c0_i32, %arg1 : i32, i32
  }
  func.func @transform_5(%arg0: i32, %arg1: i32, %arg2: i32) -> (i32, i32) {
    %c0_i32 = arith.constant 0 : i32
    return %arg0, %arg1 : i32, i32
  }
}

</mosaic_0001>

<llo_original>
// kernel: tpu_custom_call.1
$region0: #{tpu_custom_call.1}
  #allocation0 [shape = 'u32[]', space=smem, size = 0x4, offset = 0x4, fixed_abs, tag = 'smem constant byte address 0x4 - core index']
  #allocation1 [shape = 'u32[72,128]{1,0:T(1,128)}', space=vmem, size = 0x9000, scoped, tag = 'internal scratch']
  #allocation2 [shape = 'f32[8,128]{1,0:T(8,128)}', space=vmem, size = 0x1000, scoped, tag = 'scratch operand']
  %s0 = inlined_call_operand.vmem [shape: f32[16,128], index: 0, kind: input, shape index: {}]
  %s1 = inlined_call_operand.hbm [shape: f32[128,128], index: 1, kind: input, shape index: {}]
  %s2 = inlined_call_operand.vmem [shape: f32[16,4], index: 2, kind: input, shape index: {}]
  %s3 = inlined_call_operand.vmem [shape: f32[4,128], index: 3, kind: input, shape index: {}]
  %s4 = inlined_call_operand.vmem [shape: f32[1,128], index: 4, kind: input, shape index: {}]
  %s5 = inlined_call_operand.hbm [shape: f32[16,128], index: 5, kind: output, shape index: {}]
  %s6 = sld [smem:[#allocation0]]
  $region65: #{tpu_custom_call.1} parent=0
    _
  %s8 = ssub.s32 1, %s6
  %s9 = scalar_select 0, %s8, %s6
  $region1: #{tpu_custom_call.1} parent=0
    #allocation3 [shape = 'u8[65536]{0}', space=vmem, size = 0x10000, scoped, tag = 'input window, operand 1, single buffered']
    #allocation4 [shape = 's32[2]{0}', space=sflag, size = 0x8, scoped, tag = 'scoped memory for tpu_custom_call.1']
    #allocation5 [shape = 's32[2]{0}', space=sflag, size = 0x8, scoped, tag = 'scoped memory for tpu_custom_call.1']
    #allocation6 [shape = 'u8[8192]{0}', space=vmem, size = 0x2000, scoped, tag = 'output window, operand 0']
    %10 = vsyncpa [#allocation4], 0
    %11 = vsyncpa [#allocation5], 0
    %s12 = scalar_lea.sflag [#allocation5], 1
    %13 = vsyncpa %s12, 0
    loop: start=0, step=1, limit=4
    $region2: #{tpu_custom_call.1} parent=1 // loop_pre_header
      _
    $region3: #{tpu_custom_call.1} parent=1 // loop_header
      %s15 = sphi 0, %s19
      %p16 = scmp.ge.s32.totalorder %s15, 4
      %s22 = sphi 0, %s41
      %s23 = sphi 0, %s37
      %s24 = sphi 0, %s33
      %s25 = sphi 0, %s22
      %s26 = sphi 0, %s23
      %s27 = sphi 0, %s24
      %s28 = sphi 0, %s25
      %s29 = sphi 0, %s26
      %s30 = sphi 0, %s27
      %s46 = sphi 0, %s48
      %s49 = sphi 0, %s46
      %s50 = sphi 0, %s49
      %s66 = sphi 0, %s50
      %s74 = sphi 0, %s76
      %s77 = sphi 0, %s74
      %s78 = sphi 0, %s77
      %s94 = sphi 0, %s78
      %s100 = sphi 0, %s102
      %s103 = sphi 0, %s100
      %s104 = sphi 0, %s103
      %s120 = sphi 0, %s104
      %s126 = sphi 0, %s128
      %s129 = sphi 0, %s126
      %s130 = sphi 0, %s129
      %s146 = sphi 0, %s130
      %s152 = sphi 0, %s154
      %s155 = sphi 0, %s152
      %s156 = sphi 0, %s155
      %s172 = sphi 0, %s156
      %s180 = sphi 0, %s182
      %s183 = sphi 0, %s180
      %s184 = sphi 0, %s183
      %s200 = sphi 0, %s184
    $region4: #{tpu_custom_call.1} parent=1 // loop_header_branch
      %18 = sbr.rel (%p16) target = $region8
    $region5: #{tpu_custom_call.1} parent=1 // loop_body
      %s20 = ssub.s32 %s15, 1
      %s21 = ssub.s32 %s15, 2
      %s31 = sadd.s32 1, %s24
      %p32 = scmp.ge.s32.totalorder %s31, 1
      %s33 = scalar_select %p32, 0, %s31
      %s34 = sadd.s32 1, %s23
      %s35 = scalar_select %p32, %s34, %s23
      %p36 = scmp.ge.s32.totalorder %s35, 1
      %s37 = scalar_select %p36, 0, %s35
      %s38 = sadd.s32 1, %s22
      %s39 = scalar_select %p36, %s38, %s22
      %p40 = scmp.ge.s32.totalorder %s39, 2
      %s41 = scalar_select %p40, 0, %s39
      %s42 = ssub.s32 %s22, %s41
      %s43 = ssub.s32 %s24, %s33
      %s44 = sor.u32 %s42, %s43
      %p45 = scmp.eq.s32.totalorder %s44, 0
      %s47 = sadd.s32 %s46, 1
      %s48 = scalar_select %p45, %s46, %s47
      %p51 = pneg %p45
      %p52 = scmp.eq.s32.totalorder %s15, 1
      %p53 = por %p51, %p52
      %p54 = scmp.ne.s32.totalorder %s46, %s49
      %p55 = scmp.eq.s32.totalorder %s15, 0
      %p56 = por %p54, %p55
      %p57 = scmp.ne.s32.totalorder %s46, %s49
      %p58 = scmp.eq.s32.totalorder %s20, 1
      %p59 = por %p57, %p58
      %p60 = scmp.ne.s32.totalorder %s49, %s50
      %p61 = scmp.eq.s32.totalorder %s20, 0
      %p62 = por %p60, %p61
      %p63 = scmp.ne.s32.totalorder %s49, %s50
      %p64 = scmp.eq.s32.totalorder %s21, 1
      %p65 = por %p63, %p64
      %p67 = scmp.ne.s32.totalorder %s50, %s66
      %p68 = scmp.eq.s32.totalorder %s21, 0
      %p69 = por %p67, %p68
      %s70 = ssub.s32 %s24, %s33
      %s71 = ssub.s32 %s23, %s37
      %s72 = sor.u32 %s70, %s71
      %p73 = scmp.eq.s32.totalorder %s72, 0
      %s75 = sadd.s32 %s74, 1
      %s76 = scalar_select %p73, %s74, %s75
      %p79 = pneg %p73
      %p80 = scmp.eq.s32.totalorder %s15, 1
      %p81 = por %p79, %p80
      %p82 = scmp.ne.s32.totalorder %s74, %s77
      %p83 = scmp.eq.s32.totalorder %s15, 0
      %p84 = por %p82, %p83
      %p85 = scmp.ne.s32.totalorder %s74, %s77
      %p86 = scmp.eq.s32.totalorder %s20, 1
      %p87 = por %p85, %p86
      %p88 = scmp.ne.s32.totalorder %s77, %s78
      %p89 = scmp.eq.s32.totalorder %s20, 0
      %p90 = por %p88, %p89
      %p91 = scmp.ne.s32.totalorder %s77, %s78
      %p92 = scmp.eq.s32.totalorder %s21, 1
      %p93 = por %p91, %p92
      %p95 = scmp.ne.s32.totalorder %s78, %s94
      %p96 = scmp.eq.s32.totalorder %s21, 0
      %p97 = por %p95, %p96
      %s98 = ssub.s32 %s22, %s41
      %p99 = scmp.eq.s32.totalorder %s98, 0
      %s101 = sadd.s32 %s100, 1
      %s102 = scalar_select %p99, %s100, %s101
      %p105 = pneg %p99
      %p106 = scmp.eq.s32.totalorder %s15, 1
      %p107 = por %p105, %p106
      %p108 = scmp.ne.s32.totalorder %s100, %s103
      %p109 = scmp.eq.s32.totalorder %s15, 0
      %p110 = por %p108, %p109
      %p111 = scmp.ne.s32.totalorder %s100, %s103
      %p112 = scmp.eq.s32.totalorder %s20, 1
      %p113 = por %p111, %p112
      %p114 = scmp.ne.s32.totalorder %s103, %s104
      %p115 = scmp.eq.s32.totalorder %s20, 0
      %p116 = por %p114, %p115
      %p117 = scmp.ne.s32.totalorder %s103, %s104
      %p118 = scmp.eq.s32.totalorder %s21, 1
      %p119 = por %p117, %p118
      %p121 = scmp.ne.s32.totalorder %s104, %s120
      %p122 = scmp.eq.s32.totalorder %s21, 0
      %p123 = por %p121, %p122
      %s124 = ssub.s32 %s23, %s37
      %p125 = scmp.eq.s32.totalorder %s124, 0
      %s127 = sadd.s32 %s126, 1
      %s128 = scalar_select %p125, %s126, %s127
      %p131 = pneg %p125
      %p132 = scmp.eq.s32.totalorder %s15, 1
      %p133 = por %p131, %p132
      %p134 = scmp.ne.s32.totalorder %s126, %s129
      %p135 = scmp.eq.s32.totalorder %s15, 0
      %p136 = por %p134, %p135
      %p137 = scmp.ne.s32.totalorder %s126, %s129
      %p138 = scmp.eq.s32.totalorder %s20, 1
      %p139 = por %p137, %p138
      %p140 = scmp.ne.s32.totalorder %s129, %s130
      %p141 = scmp.eq.s32.totalorder %s20, 0
      %p142 = por %p140, %p141
      %p143 = scmp.ne.s32.totalorder %s129, %s130
      %p144 = scmp.eq.s32.totalorder %s21, 1
      %p145 = por %p143, %p144
      %p147 = scmp.ne.s32.totalorder %s130, %s146
      %p148 = scmp.eq.s32.totalorder %s21, 0
      %p149 = por %p147, %p148
      %s150 = ssub.s32 %s23, %s37
      %p151 = scmp.eq.s32.totalorder %s150, 0
      %s153 = sadd.s32 %s152, 1
      %s154 = scalar_select %p151, %s152, %s153
      %p157 = pneg %p151
      %p158 = scmp.eq.s32.totalorder %s15, 1
      %p159 = por %p157, %p158
      %p160 = scmp.ne.s32.totalorder %s152, %s155
      %p161 = scmp.eq.s32.totalorder %s15, 0
      %p162 = por %p160, %p161
      %p163 = scmp.ne.s32.totalorder %s152, %s155
      %p164 = scmp.eq.s32.totalorder %s20, 1
      %p165 = por %p163, %p164
      %p166 = scmp.ne.s32.totalorder %s155, %s156
      %p167 = scmp.eq.s32.totalorder %s20, 0
      %p168 = por %p166, %p167
      %p169 = scmp.ne.s32.totalorder %s155, %s156
      %p170 = scmp.eq.s32.totalorder %s21, 1
      %p171 = por %p169, %p170
      %p173 = scmp.ne.s32.totalorder %s156, %s172
      %p174 = scmp.eq.s32.totalorder %s21, 0
      %p175 = por %p173, %p174
      %s176 = ssub.s32 %s22, %s41
      %s177 = ssub.s32 %s23, %s37
      %s178 = sor.u32 %s176, %s177
      %p179 = scmp.eq.s32.totalorder %s178, 0
      %s181 = sadd.s32 %s180, 1
      %s182 = scalar_select %p179, %s180, %s181
      %p185 = pneg %p179
      %p186 = scmp.eq.s32.totalorder %s15, 1
      %p187 = por %p185, %p186
      %p188 = scmp.ne.s32.totalorder %s180, %s183
      %p189 = scmp.eq.s32.totalorder %s15, 0
      %p190 = por %p188, %p189
      %p191 = scmp.ne.s32.totalorder %s180, %s183
      %p192 = scmp.eq.s32.totalorder %s20, 1
      %p193 = por %p191, %p192
      %p194 = scmp.ne.s32.totalorder %s183, %s184
      %p195 = scmp.eq.s32.totalorder %s20, 0
      %p196 = por %p194, %p195
      %p197 = scmp.ne.s32.totalorder %s183, %s184
      %p198 = scmp.eq.s32.totalorder %s21, 1
      %p199 = por %p197, %p198
      %p201 = scmp.ne.s32.totalorder %s184, %s200
      %p202 = scmp.eq.s32.totalorder %s21, 0
      %p203 = por %p201, %p202
      %p204 = scmp.le.s32.totalorder 1, %s15
      %p205 = scmp.lt.s32.totalorder %s15, 3
      %p206 = pnand %p204, %p205
      %p207 = pneg %p206
      // Predicated region
      $region9: #{tpu_custom_call.1} parent=5 // pred_check
        _
      $region10: #{tpu_custom_call.1} parent=5 // pred_check_branch
        %209 = sbr.rel (%p206) target = $region12
      $region11: #{tpu_custom_call.1} parent=5 // pred_region
        %s210 = ssub.s32 %s15, 1
        // Predicated region
        $region13: #{tpu_custom_call.1} parent=11 // pred_check
          %p211 = pneg %p90
        $region14: #{tpu_custom_call.1} parent=11 // pred_check_branch
          %213 = sbr.rel (%p211) target = $region16
        $region15: #{tpu_custom_call.1} parent=11 // pred_region
          %s214 = smul.u32 16, %s27
          %216 = vsyncadd [#allocation4], 0
          %s217 = sadd.s32 %s26, %s214
          %s218 = smul.addr %s217, 8
          %s219 = scalar_lea.hbm %s1, %s218
          %s220 = sshll.u32 %s219, 4
          %s221 = int_to_ptr.hbm [resolvable:$true] %s220
          %s222 = sshll.u32 [#allocation3], 4
          %s223 = int_to_ptr.vmem [resolvable:$true] %s222
          %228 = dma.hbm_to_vmem [thread:$0]  %s221, 2048, %s223, [#allocation4], 128, 128, 8
        $region16: #{tpu_custom_call.1} parent=11 // pred_fallthru
          _
        // Predicated region
        $region17: #{tpu_custom_call.1} parent=11 // pred_check
          %p229 = pneg %p142
        $region18: #{tpu_custom_call.1} parent=11 // pred_check_branch
          %231 = sbr.rel (%p229) target = $region20
        $region19: #{tpu_custom_call.1} parent=11 // pred_region
          %p232 = scmp.lt.s32.totalorder %s26, 0
          %s233 = scalar_select %p232, %s26, 0
          %s234 = smul.addr %s233, 4
          %s235 = scalar_lea.vmem %s3, %s234
        $region20: #{tpu_custom_call.1} parent=11 // pred_fallthru
          _
        // Predicated region
        $region21: #{tpu_custom_call.1} parent=11 // pred_check
          %p236 = pneg %p168
        $region22: #{tpu_custom_call.1} parent=11 // pred_check_branch
          %238 = sbr.rel (%p236) target = $region24
        $region23: #{tpu_custom_call.1} parent=11 // pred_region
          %p239 = scmp.lt.s32.totalorder %s26, 0
          %s240 = scalar_select %p239, %s26, 0
          %s241 = scalar_lea.vmem %s4, %s240
        $region24: #{tpu_custom_call.1} parent=11 // pred_fallthru
          _
      $region12: #{tpu_custom_call.1} parent=5 // pred_fallthru
        _
      %p242 = scmp.lt.s32.totalorder %s15, 2
      // Predicated region
      $region25: #{tpu_custom_call.1} parent=5 // pred_check
        %p243 = pneg %p242
      $region26: #{tpu_custom_call.1} parent=5 // pred_check_branch
        %245 = sbr.rel (%p243) target = $region28
      $region27: #{tpu_custom_call.1} parent=5 // pred_region
        // Predicated region
        $region29: #{tpu_custom_call.1} parent=27 // pred_check
          %p246 = pneg %p56
        $region30: #{tpu_custom_call.1} parent=27 // pred_check_branch
          %248 = sbr.rel (%p246) target = $region32
        $region31: #{tpu_custom_call.1} parent=27 // pred_region
          %p249 = scmp.lt.s32.totalorder %s22, 1
          %s250 = scalar_select %p249, %s22, 1
          %p251 = scmp.lt.s32.totalorder %s24, 0
          %s252 = scalar_select %p251, %s24, 0
          %s253 = sadd.s32 %s252, %s250
          %s254 = smul.addr %s253, 8
          %s255 = scalar_lea.vmem %s0, %s254
        $region32: #{tpu_custom_call.1} parent=27 // pred_fallthru
          _
        // Predicated region
        $region33: #{tpu_custom_call.1} parent=27 // pred_check
          %p256 = pneg %p110
        $region34: #{tpu_custom_call.1} parent=27 // pred_check_branch
          %258 = sbr.rel (%p256) target = $region36
        $region35: #{tpu_custom_call.1} parent=27 // pred_region
          %p259 = scmp.lt.s32.totalorder %s22, 1
          %s260 = scalar_select %p259, %s22, 1
          %s261 = smul.addr %s260, 8
          %s262 = scalar_lea.vmem %s2, %s261
        $region36: #{tpu_custom_call.1} parent=27 // pred_fallthru
          _
      $region28: #{tpu_custom_call.1} parent=5 // pred_fallthru
        _
      %p263 = scmp.le.s32.totalorder 1, %s15
      %p264 = scmp.lt.s32.totalorder %s15, 3
      %p265 = pnand %p263, %p264
      %p266 = pneg %p265
      // Predicated region
      $region37: #{tpu_custom_call.1} parent=5 // pred_check
        _
      $region38: #{tpu_custom_call.1} parent=5 // pred_check_branch
        %268 = sbr.rel (%p265) target = $region40
      $region39: #{tpu_custom_call.1} parent=5 // pred_region
        %s269 = ssub.s32 %s15, 1
        // Predicated region
        $region41: #{tpu_custom_call.1} parent=39 // pred_check
          %p270 = pneg %p90
        $region42: #{tpu_custom_call.1} parent=39 // pred_check_branch
          %272 = sbr.rel (%p270) target = $region44
        $region43: #{tpu_custom_call.1} parent=39 // pred_region
          %274 = dma.done [#allocation4], 2048
        $region44: #{tpu_custom_call.1} parent=39 // pred_fallthru
          _
        %p275 = scmp.lt.s32.totalorder %s25, 1
        %s276 = scalar_select %p275, %s25, 1
        %p277 = scmp.lt.s32.totalorder %s27, 0
        %s278 = scalar_select %p277, %s27, 0
        %s279 = sadd.s32 %s278, %s276
        %s280 = smul.addr %s279, 8
        %s281 = scalar_lea.vmem %s0, %s280
        %p282 = pneg %p62
        %p283 = pneg %p59
        %p284 = pneg %p90
        %p285 = pneg %p87
        %p286 = scmp.lt.s32.totalorder %s25, 1
        %s287 = scalar_select %p286, %s25, 1
        %s288 = smul.addr %s287, 8
        %s289 = scalar_lea.vmem %s2, %s288
        %p290 = pneg %p116
        %p291 = pneg %p113
        %p292 = scmp.lt.s32.totalorder %s26, 0
        %s293 = scalar_select %p292, %s26, 0
        %s294 = smul.addr %s293, 4
        %s295 = scalar_lea.vmem %s3, %s294
        %p296 = pneg %p142
        %p297 = pneg %p139
        %p298 = scmp.lt.s32.totalorder %s26, 0
        %s299 = scalar_select %p298, %s26, 0
        %s300 = scalar_lea.vmem %s4, %s299
        %p301 = pneg %p168
        %p302 = pneg %p165
        %p303 = pneg %p196
        %p304 = pneg %p193
        %s305 = sand.u32 %s183, 1
        %s306 = scalar_lea.sflag [#allocation5], %s305
        %s307 = sand.u32 %s183, 1
        %s308 = smul.addr %s307, 8
        %s309 = scalar_lea.vmem [#allocation6], %s308
        %p310 = scmp.lt.s32.totalorder %s25, 1
        %s311 = scalar_select %p310, %s25, 1
        %p312 = scmp.lt.s32.totalorder %s27, 0
        %s313 = scalar_select %p312, %s27, 0
        %s314 = sadd.s32 %s313, %s311
        %s315 = smul.addr %s314, 8
        %s316 = scalar_lea.vmem %s0, %s315
        %s317 = smul.u32 16, %s27
        %p318 = scmp.lt.s32.totalorder %s25, 1
        %s319 = scalar_select %p318, %s25, 1
        %s320 = smul.addr %s319, 8
        %s321 = scalar_lea.vmem %s2, %s320
        %p322 = scmp.lt.s32.totalorder %s26, 0
        %s323 = scalar_select %p322, %s26, 0
        %s324 = smul.addr %s323, 4
        %s325 = scalar_lea.vmem %s3, %s324
        %p326 = scmp.lt.s32.totalorder %s26, 0
        %s327 = scalar_select %p326, %s26, 0
        %s328 = scalar_lea.vmem %s4, %s327
        %p329 = scmp.eq.s32.totalorder %s27, 0
        // Predicated region
        $region45: #{tpu_custom_call.1} parent=39 // pred_check
          %p330 = pneg %p329
        $region46: #{tpu_custom_call.1} parent=39 // pred_check_branch
          %332 = sbr.rel (%p330) target = $region48
        $region47: #{tpu_custom_call.1} parent=39 // pred_region
          %333 = vst [vmem:[#allocation2] sm:$0xff] 0.0
        $region48: #{tpu_custom_call.1} parent=39 // pred_fallthru
          _
        %v334 = vld [vmem:[#allocation2] sm:$0xff]
        %v335 = vld [vmem:[%s316] sm:$0xff]
        %v336 = vld [vmem:[#allocation3] sm:$0xff]
        %v337 = vld [vmem:[#allocation3 + $0x8] sm:$0xff]
        %v338 = vld [vmem:[#allocation3 + $0x10] sm:$0xff]
        %v339 = vld [vmem:[#allocation3 + $0x18] sm:$0xff]
        %v340 = vld [vmem:[#allocation3 + $0x20] sm:$0xff]
        %v341 = vld [vmem:[#allocation3 + $0x28] sm:$0xff]
        %v342 = vld [vmem:[#allocation3 + $0x30] sm:$0xff]
        %v343 = vld [vmem:[#allocation3 + $0x38] sm:$0xff]
        %v344 = vld [vmem:[#allocation3 + $0x40] sm:$0xff]
        %v345 = vld [vmem:[#allocation3 + $0x48] sm:$0xff]
        %v346 = vld [vmem:[#allocation3 + $0x50] sm:$0xff]
        %v347 = vld [vmem:[#allocation3 + $0x58] sm:$0xff]
        %v348 = vld [vmem:[#allocation3 + $0x60] sm:$0xff]
        %v349 = vld [vmem:[#allocation3 + $0x68] sm:$0xff]
        %v350 = vld [vmem:[#allocation3 + $0x70] sm:$0xff]
        %v351 = vld [vmem:[#allocation3 + $0x78] sm:$0xff]
        %352 = vmatpush.msra.mxu0 %v351
        %353 = vmatpush.msra.mxu0 %v350
        %354 = vmatpush.msra.mxu0 %v349
        %355 = vmatpush.msra.mxu0 %v348
        %356 = vmatpush.msra.mxu0 %v347
        %357 = vmatpush.msra.mxu0 %v346
        %358 = vmatpush.msra.mxu0 %v345
        %359 = vmatpush.msra.mxu0 %v344
        %360 = vmatpush.msra.mxu0 %v343
        %361 = vmatpush.msra.mxu0 %v342
        %362 = vmatpush.msra.mxu0 %v341
        %363 = vmatpush.msra.mxu0 %v340
        %364 = vmatpush.msra.mxu0 %v339
        %365 = vmatpush.msra.mxu0 %v338
        %366 = vmatpush.msra.mxu0 %v337
        %367 = vmatpush.msra.mxu0 %v336
        %368 = vmatmul.f32.gmra.mxu0 %v335
        %v369 = vpop.f32.mrf.mxu0
        %v370 = vadd.f32 0.0, %v369
        %371 = vdwg.mxu0
        %v372 = vadd.f32 %v334, %v370
        %373 = vst [vmem:[#allocation2] sm:$0xff] %v372
        // Predicated region
        $region49: #{tpu_custom_call.1} parent=39 // pred_check
          %p374 = pneg %p329
        $region50: #{tpu_custom_call.1} parent=39 // pred_check_branch
          %376 = sbr.rel (%p374) target = $region52
        $region51: #{tpu_custom_call.1} parent=39 // pred_region
          %v377 = vld [vmem:[%s321] sm:$0xff]
          %v378 = vld [vmem:[%s325] sm:$0xf]
          %vm379 = vcmask 31744
          %v381 = vsel %vm379, %v377, 0
          %vm383 = vcmask 1043456
          %v385 = vsel %vm383, %v378, 0
          %387 = vmatpush.msra.mxu0 0.0
          %388 = vmatpush.msra.mxu0 0.0
          %389 = vmatpush.msra.mxu0 0.0
          %390 = vmatpush.msra.mxu0 0.0
          %391 = vmatpush.msra.mxu0 0.0
          %392 = vmatpush.msra.mxu0 0.0
          %393 = vmatpush.msra.mxu0 0.0
          %394 = vmatpush.msra.mxu0 0.0
          %395 = vmatpush.msra.mxu0 0.0
          %396 = vmatpush.msra.mxu0 0.0
          %397 = vmatpush.msra.mxu0 0.0
          %398 = vmatpush.msra.mxu0 0.0
          %399 = vmatpush.msra.mxu0 0.0
          %400 = vmatpush.msra.mxu0 0.0
          %401 = vmatpush.msra.mxu0 0.0
          %402 = vmatpush.msra.mxu0 %v385
          %403 = vmatmul.f32.gmra.mxu0 %v381
          %v404 = vpop.f32.mrf.mxu0
          %v405 = vadd.f32 0.0, %v404
          %406 = vdwg.mxu0
          %v407 = vld [vmem:[#allocation2] sm:$0xff]
          %v408 = vadd.f32 %v407, %v405
          %v409 = vld [vmem:[%s328] sm:$0x1]
          %v411 = vperm.slane %v409, 0
          %v413 = vadd.f32 %v408, %v411
          %414 = vst [vmem:[%s309] sm:$0xff] %v413
        $region52: #{tpu_custom_call.1} parent=39 // pred_fallthru
          _
        %s415 = sand.u32 %s183, 1
        %s416 = scalar_lea.sflag [#allocation5], %s415
        %s417 = sand.u32 %s183, 1
        %s418 = smul.addr %s417, 8
        %s419 = scalar_lea.vmem [#allocation6], %s418
        // Predicated region
        $region53: #{tpu_custom_call.1} parent=39 // pred_check
          %p420 = pneg %p193
        $region54: #{tpu_custom_call.1} parent=39 // pred_check_branch
          %422 = sbr.rel (%p420) target = $region56
        $region55: #{tpu_custom_call.1} parent=39 // pred_region
          %424 = vsyncadd %s416, 0
          %s425 = sadd.s32 %s26, %s25
          %s426 = smul.addr %s425, 8
          %s427 = scalar_lea.hbm %s5, %s426
          %s429 = sshll.u32 %s419, 4
          %s430 = int_to_ptr.vmem [resolvable:$true] %s429
          %s431 = sshll.u32 %s427, 4
          %s432 = int_to_ptr.hbm [resolvable:$true] %s431
          %434 = dma.vmem_to_hbm [thread:$0]  %s430, 128, %s432, %s416
        $region56: #{tpu_custom_call.1} parent=39 // pred_fallthru
          _
      $region40: #{tpu_custom_call.1} parent=5 // pred_fallthru
        _
      %p435 = scmp.le.s32.totalorder 2, %s15
      // Predicated region
      $region57: #{tpu_custom_call.1} parent=5 // pred_check
        %p436 = pneg %p435
      $region58: #{tpu_custom_call.1} parent=5 // pred_check_branch
        %438 = sbr.rel (%p436) target = $region60
      $region59: #{tpu_custom_call.1} parent=5 // pred_region
        %s439 = ssub.s32 %s15, 2
        // Predicated region
        $region61: #{tpu_custom_call.1} parent=59 // pred_check
          %p440 = pneg %p199
        $region62: #{tpu_custom_call.1} parent=59 // pred_check_branch
          %442 = sbr.rel (%p440) target = $region64
        $region63: #{tpu_custom_call.1} parent=59 // pred_region
          %s443 = sand.u32 %s184, 1
          %s444 = scalar_lea.sflag [#allocation5], %s443
          %s445 = sand.u32 %s184, 1
          %s446 = smul.addr %s445, 8
          %s447 = scalar_lea.vmem [#allocation6], %s446
          %449 = dma.done %s444, 128
        $region64: #{tpu_custom_call.1} parent=59 // pred_fallthru
          _
      $region60: #{tpu_custom_call.1} parent=5 // pred_fallthru
        _
    $region6: #{tpu_custom_call.1} parent=1 // loop_footer
      %s19 = sadd.s32 1, %s15
    $region7: #{tpu_custom_call.1} parent=1 // loop_footer_branch
      %14 = sbr.rel target = $region3
    $region8: #{tpu_custom_call.1} parent=1 // loop_exit
      _
    %450 = vsyncpa [#allocation4], 1
    %s451 = scalar_lea.sflag [#allocation4], 1
    %452 = vsyncpa %s451, 1
    %453 = vsyncpa [#allocation5], 1
    %s454 = scalar_lea.sflag [#allocation5], 1
    %455 = vsyncpa %s454, 1

</llo_original>
